<compile_context>
chip_gen: v5e
topology: v5e:2x2
jax: 0.10.0
libtpu: 0.0.40
codegen_flags: <defaults>
</compile_context>

<pallas_src>
import jax
import jax.numpy as jnp
from jax.experimental import pallas as pl
from jax.experimental.pallas import tpu as pltpu

INPUT_DIM = 8            # (x, y, vx, vy, theta, vtheta, step_id, phi)
OUTPUT_DIM = 9           # 9 discrete actions
H_DIM = 128
L = 7                    # positional mapping depth used by MLP
MAP_DIM = INPUT_DIM * (2 * L + 1)     # 120 (original feature count)
MAP_PAD = INPUT_DIM * (2 * L + 2)     # 128 (lane-aligned, 8 zero pad rows)
OUT_PAD = 128                          # lane-dense output slab width
PI = 3.1415927410125732
# SCALE = 1.0 in the original PositionalMapping -> multiply/divide is a no-op.


# ----------------------------- Pallas kernel ------------------------------- #
def _actor_critic_kernel(
    x_ref,          # (BM, 128) f32   : x tiled 16x along lanes
    freq_ref,       # (1, 128)  f32   : 0 | 0 | 2^i*pi (sin) | 2^i*pi (cos)
    phase_ref,      # (1, 128)  f32   : pi/2 on cos lanes, else 0
    w1_ref, b1_ref,  # (128,256) bf16, (1,256) f32
    w2_ref, b2_ref,  # (256,256) bf16, (1,256) f32
    w3_ref, b3_ref,  # (256,256) bf16, (1,256) f32
    w4_ref, b4_ref,  # (256,128) bf16, (1,128) f32
    out_ref,        # (BM, 128) f32   : [probs(9) | value(1) | zeros]
):
    x = x_ref[...]                                             # (BM, 128) f32
    lane = jax.lax.broadcasted_iota(jnp.int32, x.shape, 1)     # lane index

    # Positional mapping: one fused FMA + one sin over all 128 lanes.
    # lanes 0..7  -> passthrough x,  lanes 8..15 -> sin(0)=0 (pad),
    # lanes 16..71 -> sin(2^i*pi*x), lanes 72..127 -> sin(2^i*pi*x + pi/2) = cos.
    arg = x * freq_ref[...] + phase_ref[...]
    sincos = jnp.sin(arg)
    h = jnp.where(lane < INPUT_DIM, x, sincos)                 # (BM, 128) f32

    def leaky(v):  # nn.LeakyReLU(0.2)
        return jnp.where(v >= 0.0, v, 0.2 * v)

    def dot_bf16(a, w_ref):
        # f32 activations, cast to bf16 only at the MXU; f32 accumulation.
        return jnp.dot(a.astype(jnp.bfloat16), w_ref[...],
                       preferred_element_type=jnp.float32)

    h = leaky(dot_bf16(h, w1_ref) + b1_ref[...])               # (BM, 256)
    h = leaky(dot_bf16(h, w2_ref) + b2_ref[...])               # (BM, 256)
    h = leaky(dot_bf16(h, w3_ref) + b3_ref[...])               # (BM, 256)
    head = dot_bf16(h, w4_ref) + b4_ref[...]                   # (BM, 128)

    # actor softmax over lanes 0..8 only; critic value sits at lane 9.
    logits = jnp.where(lane < OUTPUT_DIM, head, -1e30)
    m = jnp.max(logits, axis=-1, keepdims=True)
    e = jnp.exp(logits - m)                                    # pad lanes -> 0
    denom = jnp.sum(e, axis=-1, keepdims=True)
    probs = e * pl.reciprocal(denom, approx=True)
    value = jnp.where(lane == OUTPUT_DIM, head, 0.0)
    out_ref[...] = probs + value


# ----------------------------- parameter setup ----------------------------- #
def init_params(key):
    """Deterministic synthetic parameters in the ORIGINAL per-MLP layout
    (weights stored (in_features, out_features), i.e. y = x @ W + b)."""
    ks = jax.random.split(key, 16)
    it = iter(ks)

    def w(shape):
        return jax.random.normal(next(it), shape, dtype=jnp.float32) * 0.05

    def b(shape):
        return jax.random.normal(next(it), shape, dtype=jnp.float32) * 0.01

    return {
        # actor MLP: 120 -> 128 -> 128 -> 128 -> 9
        "aw1": w((MAP_DIM, H_DIM)), "ab1": b((1, H_DIM)),
        "aw2": w((H_DIM, H_DIM)),   "ab2": b((1, H_DIM)),
        "aw3": w((H_DIM, H_DIM)),   "ab3": b((1, H_DIM)),
        "aw4": w((H_DIM, OUTPUT_DIM)), "ab4": b((1, OUTPUT_DIM)),
        # critic MLP: 120 -> 128 -> 128 -> 128 -> 1
        "cw1": w((MAP_DIM, H_DIM)), "cb1": b((1, H_DIM)),
        "cw2": w((H_DIM, H_DIM)),   "cb2": b((1, H_DIM)),
        "cw3": w((H_DIM, H_DIM)),   "cb3": b((1, H_DIM)),
        "cw4": w((H_DIM, 1)),       "cb4": b((1, 1)),
    }


def _permute_pad_w1(w):
    """(120, n) original posmap row order [x, sin0, cos0, sin1, cos1, ...]
    -> (128, n) kernel order [x(8) | pad(8) | sin0..6 (56) | cos0..6 (56)]."""
    n = w.shape[1]
    out = jnp.zeros((MAP_PAD, n), jnp.float32)
    out = out.at[0:INPUT_DIM].set(w[0:INPUT_DIM])
    for i in range(L):
        sin_src = INPUT_DIM * (2 * i + 1)
        cos_src = INPUT_DIM * (2 * i + 2)
        sin_dst = 2 * INPUT_DIM + i * INPUT_DIM
        cos_dst = (2 + L) * INPUT_DIM + i * INPUT_DIM
        out = out.at[sin_dst:sin_dst + INPUT_DIM].set(w[sin_src:sin_src + INPUT_DIM])
        out = out.at[cos_dst:cos_dst + INPUT_DIM].set(w[cos_src:cos_src + INPUT_DIM])
    return out


def _block_diag(a, c):
    za = jnp.zeros((a.shape[0], c.shape[1]), jnp.float32)
    zc = jnp.zeros((c.shape[0], a.shape[1]), jnp.float32)
    return jnp.concatenate(
        [jnp.concatenate([a, za], axis=1), jnp.concatenate([zc, c], axis=1)], axis=0)


def fuse_params(p):
    """Host-side, once: fuse actor+critic, permute/pad W1 rows, pad heads,
    cast weights to bf16, and precompute the posmap frequency/phase rows."""
    w1f = jnp.concatenate([_permute_pad_w1(p["aw1"]), _permute_pad_w1(p["cw1"])], axis=1)
    b1f = jnp.concatenate([p["ab1"], p["cb1"]], axis=1)
    w2f = _block_diag(p["aw2"], p["cw2"])
    b2f = jnp.concatenate([p["ab2"], p["cb2"]], axis=1)
    w3f = _block_diag(p["aw3"], p["cw3"])
    b3f = jnp.concatenate([p["ab3"], p["cb3"]], axis=1)

    w4f = jnp.zeros((2 * H_DIM, OUT_PAD), jnp.float32)
    w4f = w4f.at[:H_DIM, :OUTPUT_DIM].set(p["aw4"])
    w4f = w4f.at[H_DIM:, OUTPUT_DIM].set(p["cw4"][:, 0])
    b4f = jnp.zeros((1, OUT_PAD), jnp.float32)
    b4f = b4f.at[0, :OUTPUT_DIM].set(p["ab4"][0])
    b4f = b4f.at[0, OUTPUT_DIM].set(p["cb4"][0, 0])

    freq = jnp.zeros((1, MAP_PAD), jnp.float32)
    phase = jnp.zeros((1, MAP_PAD), jnp.float32)
    for i in range(L):
        f = (2.0 ** i) * PI
        s0 = 2 * INPUT_DIM + i * INPUT_DIM
        c0 = (2 + L) * INPUT_DIM + i * INPUT_DIM
        freq = freq.at[0, s0:s0 + INPUT_DIM].set(f)
        freq = freq.at[0, c0:c0 + INPUT_DIM].set(f)
        phase = phase.at[0, c0:c0 + INPUT_DIM].set(PI * 0.5)

    bf16 = jnp.bfloat16
    return {
        "freq": freq, "phase": phase,
        "w1": w1f.astype(bf16), "b1": b1f,
        "w2": w2f.astype(bf16), "b2": b2f,
        "w3": w3f.astype(bf16), "b3": b3f,
        "w4": w4f.astype(bf16), "b4": b4f,
    }


# ----------------------------- wrapper / glue ------------------------------ #
def _round_up(n, m):
    return ((n + m - 1) // m) * m


def actor_critic_forward(x, fused):
    """x: (..., 8) states (a single (8,) state mirrors the PyTorch module's
    x.view([1,-1])).  Returns (probs (B, 9), value (B, 1))."""
    x2d = jnp.asarray(x, jnp.float32).reshape(-1, INPUT_DIM)
    B = x2d.shape[0]

    if B <= 128:
        BM = _round_up(max(B, 8), 8)
        Bp = BM
    else:
        BM = 128
        Bp = _round_up(B, 128)

    x_pad = jnp.zeros((Bp, INPUT_DIM), jnp.float32).at[:B].set(x2d)
    x_tiled = jnp.tile(x_pad, (1, 2 * L + 2))           # (Bp, 128)

    row_spec = lambda shape: pl.BlockSpec(shape, lambda i: (0, 0))
    out = pl.pallas_call(
        _actor_critic_kernel,
        out_shape=jax.ShapeDtypeStruct((Bp, OUT_PAD), jnp.float32),
        grid=(Bp // BM,),
        in_specs=[
            pl.BlockSpec((BM, MAP_PAD), lambda i: (i, 0)),   # x_tiled
            row_spec((1, MAP_PAD)),                          # freq
            row_spec((1, MAP_PAD)),                          # phase
            row_spec((MAP_PAD, 2 * H_DIM)),                  # w1
            row_spec((1, 2 * H_DIM)),                        # b1
            row_spec((2 * H_DIM, 2 * H_DIM)),                # w2
            row_spec((1, 2 * H_DIM)),                        # b2
            row_spec((2 * H_DIM, 2 * H_DIM)),                # w3
            row_spec((1, 2 * H_DIM)),                        # b3
            row_spec((2 * H_DIM, OUT_PAD)),                  # w4
            row_spec((1, OUT_PAD)),                          # b4
        ],
        out_specs=pl.BlockSpec((BM, OUT_PAD), lambda i: (i, 0)),
        compiler_params=pltpu.CompilerParams(dimension_semantics=("parallel",)),
    )(
        x_tiled, fused["freq"], fused["phase"],
        fused["w1"], fused["b1"], fused["w2"], fused["b2"],
        fused["w3"], fused["b3"], fused["w4"], fused["b4"],
    )

    probs = out[:B, :OUTPUT_DIM]
    value = out[:B, OUTPUT_DIM:OUTPUT_DIM + 1]
    return probs, value


# pure-JAX reference (original math: f32 weights, original posmap order)
def _reference_forward(x, params):
    x2d = jnp.asarray(x, jnp.float32).reshape(-1, INPUT_DIM)

    def posmap(v):
        parts = [v]
        for i in range(L):
            arg = (2.0 ** i) * PI * v
            parts.append(jnp.sin(arg))
            parts.append(jnp.cos(arg))
        return jnp.concatenate(parts, axis=-1)

    def leaky(v):
        return jnp.where(v >= 0.0, v, 0.2 * v)

    def mlp(v, pre):
        h = posmap(v)
        h = leaky(h @ params[pre + "w1"] + params[pre + "b1"])
        h = leaky(h @ params[pre + "w2"] + params[pre + "b2"])
        h = leaky(h @ params[pre + "w3"] + params[pre + "b3"])
        return h @ params[pre + "w4"] + params[pre + "b4"]

    logits = mlp(x2d, "a")
    probs = jax.nn.softmax(logits, axis=-1)
    value = mlp(x2d, "c")
    return probs, value


if __name__ == "__main__":
    key = jax.random.PRNGKey(0)
    k_params, k_state, k_batch = jax.random.split(key, 3)
    params = init_params(k_params)
    fused = fuse_params(params)     # one-time host-side fusion / bf16 cast

    # 1) single state (module-equivalent path, batch=1)
    state = jax.random.normal(k_state, (INPUT_DIM,), dtype=jnp.float32)
    probs1, value1 = actor_critic_forward(state, fused)
    probs1 = jax.block_until_ready(probs1)
    value1 = jax.block_until_ready(value1)
    rp1, rv1 = _reference_forward(state, params)
    assert probs1.shape == (1, OUTPUT_DIM) and value1.shape == (1, 1)
    assert jnp.allclose(jnp.sum(probs1, axis=-1), 1.0, atol=1e-2)
    assert jnp.allclose(probs1, rp1, atol=2e-2, rtol=2e-2)
    assert jnp.allclose(value1, rv1, atol=2e-2, rtol=2e-2)

    # 2) batched rollout states (the high-utilization path)
    B = 16
    states = jax.random.normal(k_batch, (B, INPUT_DIM), dtype=jnp.float32)
    probs, values = actor_critic_forward(states, fused)
    probs = jax.block_until_ready(probs)
    values = jax.block_until_ready(values)
    rp, rv = _reference_forward(states, params)
    assert probs.shape == (B, OUTPUT_DIM) and values.shape == (B, 1)
    assert jnp.allclose(jnp.sum(probs, axis=-1), 1.0, atol=1e-2)
    assert jnp.allclose(probs, rp, atol=2e-2, rtol=2e-2)
    assert jnp.allclose(values, rv, atol=2e-2, rtol=2e-2)

    print("KERNEL_OK")
</pallas_src>

<mosaic_0001>
module attributes {stable_mosaic.version = 11 : i64} {
  func.func @_actor_critic_kernel(%arg0: i32, %arg1: memref<8x128xf32, #tpu.memory_space<vmem>>, %arg2: memref<1x128xf32, #tpu.memory_space<vmem>>, %arg3: memref<1x128xf32, #tpu.memory_space<vmem>>, %arg4: memref<128x256xbf16, #tpu.memory_space<vmem>>, %arg5: memref<1x256xf32, #tpu.memory_space<vmem>>, %arg6: memref<256x256xbf16, #tpu.memory_space<vmem>>, %arg7: memref<1x256xf32, #tpu.memory_space<vmem>>, %arg8: memref<256x256xbf16, #tpu.memory_space<vmem>>, %arg9: memref<1x256xf32, #tpu.memory_space<vmem>>, %arg10: memref<256x128xbf16, #tpu.memory_space<vmem>>, %arg11: memref<1x128xf32, #tpu.memory_space<vmem>>, %arg12: memref<8x128xf32, #tpu.memory_space<vmem>>) attributes {dimension_semantics = [#tpu.dimension_semantics<parallel>], iteration_bounds = array<i64: 1>, scalar_prefetch = 0 : i64, scratch_operands = 0 : i64, tpu.core_type = #tpu.core_type<tc>, window_params = [{transform_indices = @transform_0, window_bounds = array<i64: 8, 128>}, {pipeline_mode = #tpu.pipeline_mode<synchronous>, transform_indices = @transform_1, window_bounds = array<i64: 1, 128>}, {pipeline_mode = #tpu.pipeline_mode<synchronous>, transform_indices = @transform_2, window_bounds = array<i64: 1, 128>}, {pipeline_mode = #tpu.pipeline_mode<synchronous>, transform_indices = @transform_3, window_bounds = array<i64: 128, 256>}, {pipeline_mode = #tpu.pipeline_mode<synchronous>, transform_indices = @transform_4, window_bounds = array<i64: 1, 256>}, {pipeline_mode = #tpu.pipeline_mode<synchronous>, transform_indices = @transform_5, window_bounds = array<i64: 256, 256>}, {pipeline_mode = #tpu.pipeline_mode<synchronous>, transform_indices = @transform_6, window_bounds = array<i64: 1, 256>}, {pipeline_mode = #tpu.pipeline_mode<synchronous>, transform_indices = @transform_7, window_bounds = array<i64: 256, 256>}, {pipeline_mode = #tpu.pipeline_mode<synchronous>, transform_indices = @transform_8, window_bounds = array<i64: 1, 256>}, {pipeline_mode = #tpu.pipeline_mode<synchronous>, transform_indices = @transform_9, window_bounds = array<i64: 256, 128>}, {pipeline_mode = #tpu.pipeline_mode<synchronous>, transform_indices = @transform_10, window_bounds = array<i64: 1, 128>}, {transform_indices = @transform_11, window_bounds = array<i64: 8, 128>}]} {
    %c0 = arith.constant 0 : index
    %c0_0 = arith.constant 0 : index
    %0 = vector.load %arg1[%c0, %c0_0] : memref<8x128xf32, #tpu.memory_space<vmem>>, vector<8x128xf32>
    %1 = tpu.iota {dimensions = array<i32: 1>} : vector<8x128xi32>
    %c0_1 = arith.constant 0 : index
    %c0_2 = arith.constant 0 : index
    %2 = vector.load %arg2[%c0_1, %c0_2] : memref<1x128xf32, #tpu.memory_space<vmem>>, vector<1x128xf32>
    %3 = vector.broadcast %2 : vector<1x128xf32> to vector<8x128xf32>
    %4 = arith.mulf %0, %3 : vector<8x128xf32>
    %c0_3 = arith.constant 0 : index
    %c0_4 = arith.constant 0 : index
    %5 = vector.load %arg3[%c0_3, %c0_4] : memref<1x128xf32, #tpu.memory_space<vmem>>, vector<1x128xf32>
    %6 = vector.broadcast %5 : vector<1x128xf32> to vector<8x128xf32>
    %7 = arith.addf %4, %6 : vector<8x128xf32>
    %8 = math.sin %7 : vector<8x128xf32>
    %c8_i32 = arith.constant 8 : i32
    %9 = vector.broadcast %c8_i32 : i32 to vector<8x128xi32>
    %10 = arith.cmpi slt, %1, %9 : vector<8x128xi32>
    %11 = arith.select %10, %0, %8 : vector<8x128xi1>, vector<8x128xf32>
    %12 = arith.truncf %11 : vector<8x128xf32> to vector<8x128xbf16>
    %c0_5 = arith.constant 0 : index
    %c0_6 = arith.constant 0 : index
    %13 = vector.load %arg4[%c0_5, %c0_6] : memref<128x256xbf16, #tpu.memory_space<vmem>>, vector<128x256xbf16>
    %cst = arith.constant dense<0.000000e+00> : vector<8x256xf32>
    %14 = tpu.matmul %12, %13, %cst {dimension_numbers = #tpu.dot_dimension_numbers<[1], [0], [0], [1], [0, 0, 1, 1], [], []>} : vector<8x128xbf16>, vector<128x256xbf16>, vector<8x256xf32> -> vector<8x256xf32>
    %c0_7 = arith.constant 0 : index
    %c0_8 = arith.constant 0 : index
    %15 = vector.load %arg5[%c0_7, %c0_8] : memref<1x256xf32, #tpu.memory_space<vmem>>, vector<1x256xf32>
    %16 = vector.broadcast %15 : vector<1x256xf32> to vector<8x256xf32>
    %17 = arith.addf %14, %16 : vector<8x256xf32>
    %cst_9 = arith.constant 0.000000e+00 : f32
    %18 = vector.broadcast %cst_9 : f32 to vector<8x256xf32>
    %19 = arith.cmpf oge, %17, %18 : vector<8x256xf32>
    %cst_10 = arith.constant 2.000000e-01 : f32
    %20 = vector.broadcast %cst_10 : f32 to vector<8x256xf32>
    %21 = arith.mulf %20, %17 : vector<8x256xf32>
    %22 = arith.select %19, %17, %21 : vector<8x256xi1>, vector<8x256xf32>
    %23 = arith.truncf %22 : vector<8x256xf32> to vector<8x256xbf16>
    %c0_11 = arith.constant 0 : index
    %c0_12 = arith.constant 0 : index
    %24 = vector.load %arg6[%c0_11, %c0_12] : memref<256x256xbf16, #tpu.memory_space<vmem>>, vector<256x256xbf16>
    %cst_13 = arith.constant dense<0.000000e+00> : vector<8x256xf32>
    %25 = tpu.matmul %23, %24, %cst_13 {dimension_numbers = #tpu.dot_dimension_numbers<[1], [0], [0], [1], [0, 0, 1, 1], [], []>} : vector<8x256xbf16>, vector<256x256xbf16>, vector<8x256xf32> -> vector<8x256xf32>
    %c0_14 = arith.constant 0 : index
    %c0_15 = arith.constant 0 : index
    %26 = vector.load %arg7[%c0_14, %c0_15] : memref<1x256xf32, #tpu.memory_space<vmem>>, vector<1x256xf32>
    %27 = vector.broadcast %26 : vector<1x256xf32> to vector<8x256xf32>
    %28 = arith.addf %25, %27 : vector<8x256xf32>
    %cst_16 = arith.constant 0.000000e+00 : f32
    %29 = vector.broadcast %cst_16 : f32 to vector<8x256xf32>
    %30 = arith.cmpf oge, %28, %29 : vector<8x256xf32>
    %cst_17 = arith.constant 2.000000e-01 : f32
    %31 = vector.broadcast %cst_17 : f32 to vector<8x256xf32>
    %32 = arith.mulf %31, %28 : vector<8x256xf32>
    %33 = arith.select %30, %28, %32 : vector<8x256xi1>, vector<8x256xf32>
    %34 = arith.truncf %33 : vector<8x256xf32> to vector<8x256xbf16>
    %c0_18 = arith.constant 0 : index
    %c0_19 = arith.constant 0 : index
    %35 = vector.load %arg8[%c0_18, %c0_19] : memref<256x256xbf16, #tpu.memory_space<vmem>>, vector<256x256xbf16>
    %cst_20 = arith.constant dense<0.000000e+00> : vector<8x256xf32>
    %36 = tpu.matmul %34, %35, %cst_20 {dimension_numbers = #tpu.dot_dimension_numbers<[1], [0], [0], [1], [0, 0, 1, 1], [], []>} : vector<8x256xbf16>, vector<256x256xbf16>, vector<8x256xf32> -> vector<8x256xf32>
    %c0_21 = arith.constant 0 : index
    %c0_22 = arith.constant 0 : index
    %37 = vector.load %arg9[%c0_21, %c0_22] : memref<1x256xf32, #tpu.memory_space<vmem>>, vector<1x256xf32>
    %38 = vector.broadcast %37 : vector<1x256xf32> to vector<8x256xf32>
    %39 = arith.addf %36, %38 : vector<8x256xf32>
    %cst_23 = arith.constant 0.000000e+00 : f32
    %40 = vector.broadcast %cst_23 : f32 to vector<8x256xf32>
    %41 = arith.cmpf oge, %39, %40 : vector<8x256xf32>
    %cst_24 = arith.constant 2.000000e-01 : f32
    %42 = vector.broadcast %cst_24 : f32 to vector<8x256xf32>
    %43 = arith.mulf %42, %39 : vector<8x256xf32>
    %44 = arith.select %41, %39, %43 : vector<8x256xi1>, vector<8x256xf32>
    %45 = arith.truncf %44 : vector<8x256xf32> to vector<8x256xbf16>
    %c0_25 = arith.constant 0 : index
    %c0_26 = arith.constant 0 : index
    %46 = vector.load %arg10[%c0_25, %c0_26] : memref<256x128xbf16, #tpu.memory_space<vmem>>, vector<256x128xbf16>
    %cst_27 = arith.constant dense<0.000000e+00> : vector<8x128xf32>
    %47 = tpu.matmul %45, %46, %cst_27 {dimension_numbers = #tpu.dot_dimension_numbers<[1], [0], [0], [1], [0, 0, 1, 1], [], []>} : vector<8x256xbf16>, vector<256x128xbf16>, vector<8x128xf32> -> vector<8x128xf32>
    %c0_28 = arith.constant 0 : index
    %c0_29 = arith.constant 0 : index
    %48 = vector.load %arg11[%c0_28, %c0_29] : memref<1x128xf32, #tpu.memory_space<vmem>>, vector<1x128xf32>
    %49 = vector.broadcast %48 : vector<1x128xf32> to vector<8x128xf32>
    %50 = arith.addf %47, %49 : vector<8x128xf32>
    %c9_i32 = arith.constant 9 : i32
    %51 = vector.broadcast %c9_i32 : i32 to vector<8x128xi32>
    %52 = arith.cmpi slt, %1, %51 : vector<8x128xi32>
    %cst_30 = arith.constant -1.000000e+30 : f32
    %53 = vector.broadcast %cst_30 : f32 to vector<8x128xf32>
    %54 = arith.select %52, %50, %53 : vector<8x128xi1>, vector<8x128xf32>
    %cst_31 = arith.constant dense<0xFF800000> : vector<8xf32>
    %55 = vector.multi_reduction <maximumf>, %54, %cst_31 [1] : vector<8x128xf32> to vector<8xf32>
    %56 = vector.shape_cast %55 : vector<8xf32> to vector<8x1xf32>
    %57 = vector.broadcast %56 : vector<8x1xf32> to vector<8x128xf32>
    %58 = arith.subf %54, %57 : vector<8x128xf32>
    %59 = math.exp %58 : vector<8x128xf32>
    %cst_32 = arith.constant dense<0.000000e+00> : vector<8xf32>
    %60 = vector.multi_reduction <add>, %59, %cst_32 [1] : vector<8x128xf32> to vector<8xf32>
    %61 = vector.shape_cast %60 : vector<8xf32> to vector<8x1xf32>
    %62 = tpu.reciprocal %61 {approx = true} : vector<8x1xf32> -> vector<8x1xf32>
    %63 = vector.broadcast %62 : vector<8x1xf32> to vector<8x128xf32>
    %64 = arith.mulf %59, %63 : vector<8x128xf32>
    %c9_i32_33 = arith.constant 9 : i32
    %65 = vector.broadcast %c9_i32_33 : i32 to vector<8x128xi32>
    %66 = arith.cmpi eq, %1, %65 : vector<8x128xi32>
    %cst_34 = arith.constant 0.000000e+00 : f32
    %67 = vector.broadcast %cst_34 : f32 to vector<8x128xf32>
    %68 = arith.select %66, %50, %67 : vector<8x128xi1>, vector<8x128xf32>
    %69 = arith.addf %64, %68 : vector<8x128xf32>
    %c0_35 = arith.constant 0 : index
    %c0_36 = arith.constant 0 : index
    %70 = vector.load %arg12[%c0_35, %c0_36] : memref<8x128xf32, #tpu.memory_space<vmem>>, vector<8x128xf32>
    tpu.vector_store %arg12[%c0_35, %c0_36], %69 {strides = array<i32>} : memref<8x128xf32, #tpu.memory_space<vmem>>, vector<8x128xf32>,
    return
  }
  func.func @transform_0(%arg0: i32) -> (i32, i32) {
    %c0_i32 = arith.constant 0 : i32
    %c0_i32_0 = arith.constant 0 : i32
    return %arg0, %c0_i32 : i32, i32
  }
  func.func @transform_1(%arg0: i32) -> (i32, i32) {
    %c0_i32 = arith.constant 0 : i32
    %c0_i32_0 = arith.constant 0 : i32
    %c0_i32_1 = arith.constant 0 : i32
    return %c0_i32, %c0_i32_0 : i32, i32
  }
  func.func @transform_2(%arg0: i32) -> (i32, i32) {
    %c0_i32 = arith.constant 0 : i32
    %c0_i32_0 = arith.constant 0 : i32
    %c0_i32_1 = arith.constant 0 : i32
    return %c0_i32, %c0_i32_0 : i32, i32
  }
  func.func @transform_3(%arg0: i32) -> (i32, i32) {
    %c0_i32 = arith.constant 0 : i32
    %c0_i32_0 = arith.constant 0 : i32
    %c0_i32_1 = arith.constant 0 : i32
    return %c0_i32, %c0_i32_0 : i32, i32
  }
  func.func @transform_4(%arg0: i32) -> (i32, i32) {
    %c0_i32 = arith.constant 0 : i32
    %c0_i32_0 = arith.constant 0 : i32
    %c0_i32_1 = arith.constant 0 : i32
    return %c0_i32, %c0_i32_0 : i32, i32
  }
  func.func @transform_5(%arg0: i32) -> (i32, i32) {
    %c0_i32 = arith.constant 0 : i32
    %c0_i32_0 = arith.constant 0 : i32
    %c0_i32_1 = arith.constant 0 : i32
    return %c0_i32, %c0_i32_0 : i32, i32
  }
  func.func @transform_6(%arg0: i32) -> (i32, i32) {
    %c0_i32 = arith.constant 0 : i32
    %c0_i32_0 = arith.constant 0 : i32
    %c0_i32_1 = arith.constant 0 : i32
    return %c0_i32, %c0_i32_0 : i32, i32
  }
  func.func @transform_7(%arg0: i32) -> (i32, i32) {
    %c0_i32 = arith.constant 0 : i32
    %c0_i32_0 = arith.constant 0 : i32
    %c0_i32_1 = arith.constant 0 : i32
    return %c0_i32, %c0_i32_0 : i32, i32
  }
  func.func @transform_8(%arg0: i32) -> (i32, i32) {
    %c0_i32 = arith.constant 0 : i32
    %c0_i32_0 = arith.constant 0 : i32
    %c0_i32_1 = arith.constant 0 : i32
    return %c0_i32, %c0_i32_0 : i32, i32
  }
  func.func @transform_9(%arg0: i32) -> (i32, i32) {
    %c0_i32 = arith.constant 0 : i32
    %c0_i32_0 = arith.constant 0 : i32
    %c0_i32_1 = arith.constant 0 : i32
    return %c0_i32, %c0_i32_0 : i32, i32
  }
  func.func @transform_10(%arg0: i32) -> (i32, i32) {
    %c0_i32 = arith.constant 0 : i32
    %c0_i32_0 = arith.constant 0 : i32
    %c0_i32_1 = arith.constant 0 : i32
    return %c0_i32, %c0_i32_0 : i32, i32
  }
  func.func @transform_11(%arg0: i32) -> (i32, i32) {
    %c0_i32 = arith.constant 0 : i32
    %c0_i32_0 = arith.constant 0 : i32
    return %arg0, %c0_i32 : i32, i32
  }
}

</mosaic_0001>

<llo_original>
// kernel: tpu_custom_call.1
$region0: #{tpu_custom_call.1}
  #allocation0 [shape = 'u32[]', space=smem, size = 0x4, offset = 0x4, fixed_abs, tag = 'smem constant byte address 0x4 - core index']
  #allocation1 [shape = 'u32[72,128]{1,0:T(1,128)}', space=vmem, size = 0x9000, scoped, tag = 'internal scratch']
  %s0 = inlined_call_operand.hbm [shape: f32[8,128], index: 0, kind: input, shape index: {}]
  %s1 = inlined_call_operand.hbm [shape: f32[1,128], index: 1, kind: input, shape index: {}]
  %s2 = inlined_call_operand.hbm [shape: f32[1,128], index: 2, kind: input, shape index: {}]
  %s3 = inlined_call_operand.hbm [shape: bf16[128,256], index: 3, kind: input, shape index: {}]
  %s4 = inlined_call_operand.vmem [shape: f32[1,256], index: 4, kind: input, shape index: {}]
  %s5 = inlined_call_operand.hbm [shape: bf16[256,256], index: 5, kind: input, shape index: {}]
  %s6 = inlined_call_operand.vmem [shape: f32[1,256], index: 6, kind: input, shape index: {}]
  %s7 = inlined_call_operand.hbm [shape: bf16[256,256], index: 7, kind: input, shape index: {}]
  %s8 = inlined_call_operand.vmem [shape: f32[1,256], index: 8, kind: input, shape index: {}]
  %s9 = inlined_call_operand.hbm [shape: bf16[256,128], index: 9, kind: input, shape index: {}]
  %s10 = inlined_call_operand.vmem [shape: f32[1,128], index: 10, kind: input, shape index: {}]
  %s11 = inlined_call_operand.hbm [shape: f32[8,128], index: 11, kind: output, shape index: {}]
  %s12 = sld [smem:[#allocation0]]
  $region82: #{tpu_custom_call.1} parent=0
    _
  %s14 = ssub.s32 1, %s12
  %s15 = scalar_select 0, %s14, %s12
  $region1: #{tpu_custom_call.1} parent=0
    #allocation2 [shape = 'u8[4096]{0}', space=vmem, size = 0x1000, scoped, tag = 'input window, operand 0, single buffered']
    #allocation3 [shape = 's32[1]{0}', space=sflag, size = 0x4, scoped, tag = 'scoped memory for tpu_custom_call.1']
    #allocation4 [shape = 's32[1]{0}', space=sflag, size = 0x4, scoped, tag = 'scoped memory for tpu_custom_call.1']
    #allocation5 [shape = 'u8[512]{0}', space=vmem, size = 0x400, scoped, tag = 'input window, operand 1, single buffered']
    #allocation6 [shape = 's32[1]{0}', space=sflag, size = 0x4, scoped, tag = 'scoped memory for tpu_custom_call.1']
    #allocation7 [shape = 'u8[512]{0}', space=vmem, size = 0x400, scoped, tag = 'input window, operand 2, single buffered']
    #allocation8 [shape = 'u8[65536]{0}', space=vmem, size = 0x10000, scoped, tag = 'input window, operand 3, single buffered']
    #allocation9 [shape = 's32[1]{0}', space=sflag, size = 0x4, scoped, tag = 'scoped memory for tpu_custom_call.1']
    #allocation10 [shape = 'u8[131072]{0}', space=vmem, size = 0x20000, scoped, tag = 'input window, operand 5, single buffered']
    #allocation11 [shape = 'u8[131072]{0}', space=vmem, size = 0x20000, scoped, tag = 'input window, operand 7, single buffered']
    #allocation12 [shape = 's32[1]{0}', space=sflag, size = 0x4, scoped, tag = 'scoped memory for tpu_custom_call.1']
    #allocation13 [shape = 'u8[65536]{0}', space=vmem, size = 0x10000, scoped, tag = 'input window, operand 9, single buffered']
    #allocation14 [shape = 'u8[4096]{0}', space=vmem, size = 0x1000, scoped, tag = 'output window, operand 0, single buffered']
    %16 = vsyncpa [#allocation3], 0
    %17 = vsyncpa [#allocation6], 0
    %18 = vsyncpa [#allocation9], 0
    %19 = vsyncpa [#allocation12], 0
    %20 = vsyncpa [#allocation4], 0
    // Predicated region
    $region2: #{tpu_custom_call.1} parent=1 // pred_check
      _
    $region3: #{tpu_custom_call.1} parent=1 // pred_check_branch
      %22 = sbr.rel (0) target = $region5
    $region4: #{tpu_custom_call.1} parent=1 // pred_region
      %24 = vsyncadd [#allocation3], 0
      %s26 = sshll.u32 %s0, 4
      %s27 = int_to_ptr.hbm [resolvable:$true] %s26
      %s28 = sshll.u32 [#allocation2], 4
      %s29 = int_to_ptr.vmem [resolvable:$true] %s28
      %31 = dma.hbm_to_vmem [thread:$0]  %s27, 128, %s29, [#allocation3]
    $region5: #{tpu_custom_call.1} parent=1 // pred_fallthru
      _
    // Predicated region
    $region6: #{tpu_custom_call.1} parent=1 // pred_check
      _
    $region7: #{tpu_custom_call.1} parent=1 // pred_check_branch
      %33 = sbr.rel (0) target = $region9
    $region8: #{tpu_custom_call.1} parent=1 // pred_region
      %35 = vsyncadd [#allocation6], 0
      %s37 = sshll.u32 %s1, 4
      %s38 = int_to_ptr.hbm [resolvable:$true] %s37
      %s39 = sshll.u32 [#allocation5], 4
      %s40 = int_to_ptr.vmem [resolvable:$true] %s39
      %42 = dma.hbm_to_vmem [thread:$0]  %s38, 16, %s40, [#allocation6]
    $region9: #{tpu_custom_call.1} parent=1 // pred_fallthru
      _
    // Predicated region
    $region10: #{tpu_custom_call.1} parent=1 // pred_check
      _
    $region11: #{tpu_custom_call.1} parent=1 // pred_check_branch
      %44 = sbr.rel (0) target = $region13
    $region12: #{tpu_custom_call.1} parent=1 // pred_region
      %46 = vsyncadd [#allocation6], 0
      %s48 = sshll.u32 %s2, 4
      %s49 = int_to_ptr.hbm [resolvable:$true] %s48
      %s50 = sshll.u32 [#allocation7], 4
      %s51 = int_to_ptr.vmem [resolvable:$true] %s50
      %53 = dma.hbm_to_vmem [thread:$0]  %s49, 16, %s51, [#allocation6]
    $region13: #{tpu_custom_call.1} parent=1 // pred_fallthru
      _
    // Predicated region
    $region14: #{tpu_custom_call.1} parent=1 // pred_check
      _
    $region15: #{tpu_custom_call.1} parent=1 // pred_check_branch
      %55 = sbr.rel (0) target = $region17
    $region16: #{tpu_custom_call.1} parent=1 // pred_region
      %57 = vsyncadd [#allocation9], 0
      %s58 = sshll.u32 %s3, 4
      %s59 = int_to_ptr.hbm [resolvable:$true] %s58
      %s60 = sshll.u32 [#allocation8], 4
      %s61 = int_to_ptr.vmem [resolvable:$true] %s60
      %66 = dma.hbm_to_vmem [thread:$0]  %s59, 2048, %s61, [#allocation9], 128, 128, 8
    $region17: #{tpu_custom_call.1} parent=1 // pred_fallthru
      _
    // Predicated region
    $region18: #{tpu_custom_call.1} parent=1 // pred_check
      _
    $region19: #{tpu_custom_call.1} parent=1 // pred_check_branch
      %68 = sbr.rel (0) target = $region21
    $region20: #{tpu_custom_call.1} parent=1 // pred_region
      _
    $region21: #{tpu_custom_call.1} parent=1 // pred_fallthru
      _
    // Predicated region
    $region22: #{tpu_custom_call.1} parent=1 // pred_check
      _
    $region23: #{tpu_custom_call.1} parent=1 // pred_check_branch
      %70 = sbr.rel (0) target = $region25
    $region24: #{tpu_custom_call.1} parent=1 // pred_region
      %72 = vsyncadd [#allocation9], 0
      %s73 = sshll.u32 %s5, 4
      %s74 = int_to_ptr.hbm [resolvable:$true] %s73
      %s75 = sshll.u32 [#allocation10], 4
      %s76 = int_to_ptr.vmem [resolvable:$true] %s75
      %81 = dma.hbm_to_vmem [thread:$0]  %s74, 4096, %s76, [#allocation9], 128, 128, 8
    $region25: #{tpu_custom_call.1} parent=1 // pred_fallthru
      _
    // Predicated region
    $region26: #{tpu_custom_call.1} parent=1 // pred_check
      _
    $region27: #{tpu_custom_call.1} parent=1 // pred_check_branch
      %83 = sbr.rel (0) target = $region29
    $region28: #{tpu_custom_call.1} parent=1 // pred_region
      _
    $region29: #{tpu_custom_call.1} parent=1 // pred_fallthru
      _
    // Predicated region
    $region30: #{tpu_custom_call.1} parent=1 // pred_check
      _
    $region31: #{tpu_custom_call.1} parent=1 // pred_check_branch
      %85 = sbr.rel (0) target = $region33
    $region32: #{tpu_custom_call.1} parent=1 // pred_region
      %87 = vsyncadd [#allocation12], 0
      %s88 = sshll.u32 %s7, 4
      %s89 = int_to_ptr.hbm [resolvable:$true] %s88
      %s90 = sshll.u32 [#allocation11], 4
      %s91 = int_to_ptr.vmem [resolvable:$true] %s90
      %96 = dma.hbm_to_vmem [thread:$0]  %s89, 4096, %s91, [#allocation12], 128, 128, 8
    $region33: #{tpu_custom_call.1} parent=1 // pred_fallthru
      _
    // Predicated region
    $region34: #{tpu_custom_call.1} parent=1 // pred_check
      _
    $region35: #{tpu_custom_call.1} parent=1 // pred_check_branch
      %98 = sbr.rel (0) target = $region37
    $region36: #{tpu_custom_call.1} parent=1 // pred_region
      _
    $region37: #{tpu_custom_call.1} parent=1 // pred_fallthru
      _
    // Predicated region
    $region38: #{tpu_custom_call.1} parent=1 // pred_check
      _
    $region39: #{tpu_custom_call.1} parent=1 // pred_check_branch
      %100 = sbr.rel (0) target = $region41
    $region40: #{tpu_custom_call.1} parent=1 // pred_region
      %102 = vsyncadd [#allocation12], 0
      %s103 = sshll.u32 %s9, 4
      %s104 = int_to_ptr.hbm [resolvable:$true] %s103
      %s105 = sshll.u32 [#allocation13], 4
      %s106 = int_to_ptr.vmem [resolvable:$true] %s105
      %111 = dma.hbm_to_vmem [thread:$0]  %s104, 2048, %s106, [#allocation12], 64, 64, 4
    $region41: #{tpu_custom_call.1} parent=1 // pred_fallthru
      _
    // Predicated region
    $region42: #{tpu_custom_call.1} parent=1 // pred_check
      _
    $region43: #{tpu_custom_call.1} parent=1 // pred_check_branch
      %113 = sbr.rel (0) target = $region45
    $region44: #{tpu_custom_call.1} parent=1 // pred_region
      _
    $region45: #{tpu_custom_call.1} parent=1 // pred_fallthru
      _
    // Predicated region
    $region46: #{tpu_custom_call.1} parent=1 // pred_check
      _
    $region47: #{tpu_custom_call.1} parent=1 // pred_check_branch
      %115 = sbr.rel (0) target = $region49
    $region48: #{tpu_custom_call.1} parent=1 // pred_region
      %117 = dma.done [#allocation3], 128
    $region49: #{tpu_custom_call.1} parent=1 // pred_fallthru
      _
    // Predicated region
    $region50: #{tpu_custom_call.1} parent=1 // pred_check
      _
    $region51: #{tpu_custom_call.1} parent=1 // pred_check_branch
      %119 = sbr.rel (0) target = $region53
    $region52: #{tpu_custom_call.1} parent=1 // pred_region
      %121 = dma.done [#allocation6], 16
    $region53: #{tpu_custom_call.1} parent=1 // pred_fallthru
      _
    // Predicated region
    $region54: #{tpu_custom_call.1} parent=1 // pred_check
      _
    $region55: #{tpu_custom_call.1} parent=1 // pred_check_branch
      %123 = sbr.rel (0) target = $region57
    $region56: #{tpu_custom_call.1} parent=1 // pred_region
      %125 = dma.done [#allocation6], 16
    $region57: #{tpu_custom_call.1} parent=1 // pred_fallthru
      _
    // Predicated region
    $region58: #{tpu_custom_call.1} parent=1 // pred_check
      _
    $region59: #{tpu_custom_call.1} parent=1 // pred_check_branch
      %127 = sbr.rel (0) target = $region61
    $region60: #{tpu_custom_call.1} parent=1 // pred_region
      %129 = dma.done [#allocation9], 2048
    $region61: #{tpu_custom_call.1} parent=1 // pred_fallthru
      _
    // Predicated region
    $region62: #{tpu_custom_call.1} parent=1 // pred_check
      _
    $region63: #{tpu_custom_call.1} parent=1 // pred_check_branch
      %131 = sbr.rel (0) target = $region65
    $region64: #{tpu_custom_call.1} parent=1 // pred_region
      %133 = dma.done [#allocation9], 4096
    $region65: #{tpu_custom_call.1} parent=1 // pred_fallthru
      _
    // Predicated region
    $region66: #{tpu_custom_call.1} parent=1 // pred_check
      _
    $region67: #{tpu_custom_call.1} parent=1 // pred_check_branch
      %135 = sbr.rel (0) target = $region69
    $region68: #{tpu_custom_call.1} parent=1 // pred_region
      %137 = dma.done [#allocation12], 4096
    $region69: #{tpu_custom_call.1} parent=1 // pred_fallthru
      _
    // Predicated region
    $region70: #{tpu_custom_call.1} parent=1 // pred_check
      _
    $region71: #{tpu_custom_call.1} parent=1 // pred_check_branch
      %139 = sbr.rel (0) target = $region73
    $region72: #{tpu_custom_call.1} parent=1 // pred_region
      %141 = dma.done [#allocation12], 2048
    $region73: #{tpu_custom_call.1} parent=1 // pred_fallthru
      _
    %v142 = vld [vmem:[#allocation2] sm:$0xff]
    %v143 = vlaneseq
    %v144 = vand.u32 %v143, 127
    %v145 = vld [vmem:[#allocation5] sm:$0x1]
    %v147 = vperm.slane %v145, 0
    %v149 = vmul.f32 %v142, %v147
    %v150 = vld [vmem:[#allocation7] sm:$0x1]
    %v152 = vperm.slane %v150, 0
    %v154 = vadd.f32 %v149, %v152
    %v155 = vand.u32 2147483647, %v154
    %vm156 = vcmp.le.f32.partialorder %v155, 0.7853982
    %vm157 = vcmp.lt.s32.totalorder %v154, 0
    %v158 = vand.u32 %v154, 2139095040
    %v159 = vshrl.u32 %v158, 23
    %v160 = vsub.s32 %v159, 127
    %v161 = vand.u32 2147483647, %v154
    %v162 = vand.u32 %v161, 8388607
    %v163 = vor.u32 %v162, 8388608
    %v164 = vsub.s32 0, %v163
    %v165 = vadd.s32 %v160, 1
    %vm166 = vcmp.gt.s32.totalorder %v165, 0
    %v167 = vsel %vm166, %v165, 0
    %v168 = vshrl.u32 %v167, 5
    %v169 = vand.u32 %v167, 31
    %v170 = vsub.s32 32, %v169
    %v171 = vshrl.u32 683565275, %v170
    %v172 = vshll.u32 683565275, %v169
    %v173 = vshrl.u32 2475754826, %v170
    %v174 = vor.u32 %v172, %v173
    %v175 = vshll.u32 2475754826, %v169
    %v176 = vshrl.u32 2131351028, %v170
    %v177 = vor.u32 %v175, %v176
    %v178 = vshll.u32 2131351028, %v169
    %v179 = vshrl.u32 2102212464, %v170
    %v180 = vor.u32 %v178, %v179
    %v181 = vshll.u32 2102212464, %v169
    %v182 = vshrl.u32 920167782, %v170
    %v183 = vor.u32 %v181, %v182
    %v184 = vshll.u32 920167782, %v169
    %v185 = vshrl.u32 1326507024, %v170
    %v186 = vor.u32 %v184, %v185
    %vm187 = vcmp.lt.s32.totalorder %v168, 1
    %vm188 = vcmp.lt.s32.totalorder %v168, 2
    %vm189 = vcmp.lt.s32.totalorder %v168, 3
    %vm190 = vcmp.lt.s32.totalorder %v168, 4
    %v191 = vsel %vm187, %v171, %v174
    %v192 = vsel %vm190, %v180, 2102212464
    %v193 = vsel %vm189, %v177, %v192
    %v194 = vsel %vm188, %v191, %v193
    %v195 = vsel %vm187, %v174, %v177
    %v196 = vsel %vm190, %v183, 920167782
    %v197 = vsel %vm189, %v180, %v196
    %v198 = vsel %vm188, %v195, %v197
    %v199 = vsel %vm187, %v177, %v180
    %v200 = vsel %vm190, %v186, 1326507024
    %v201 = vsel %vm189, %v183, %v200
    %v202 = vsel %vm188, %v199, %v201
    %v203 = vshll.u32 %v163, 8
    %v204 = vand.u32 %v203, 65535
    %v205 = vshrl.u32 %v203, 16
    %v206 = vand.u32 %v202, 65535
    %v207 = vshrl.u32 %v202, 16
    %v208 = vmul.u32 %v204, %v206
    %v209 = vmul.u32 %v204, %v207
    %v210 = vmul.u32 %v205, %v206
    %v211 = vmul.u32 %v205, %v207
    %v212 = vshll.u32 %v209, 16
    %v213 = vshrl.u32 %v209, 16
    %v214 = vshll.u32 %v210, 16
    %v215 = vshrl.u32 %v210, 16
    %vm216 = vc.u32 %v208, %v212
    %v217 = vsel %vm216, 1, 0
    %v218 = vadd.s32 %v208, %v212
    %v219 = vadd.s32 %v211, %v217
    %vm220 = vc.u32 %v218, %v214
    %v221 = vsel %vm220, 1, 0
    %v222 = vadd.s32 %v218, %v214
    %v223 = vadd.s32 %v219, %v221
    %v224 = vadd.s32 %v223, %v213
    %v225 = vadd.s32 %v224, %v215
    %v226 = vand.u32 %v203, 65535
    %v227 = vshrl.u32 %v203, 16
    %v228 = vand.u32 %v198, 65535
    %v229 = vshrl.u32 %v198, 16
    %v230 = vmul.u32 %v226, %v228
    %v231 = vmul.u32 %v226, %v229
    %v232 = vmul.u32 %v227, %v228
    %v233 = vmul.u32 %v227, %v229
    %v234 = vshll.u32 %v231, 16
    %v235 = vshrl.u32 %v231, 16
    %v236 = vshll.u32 %v232, 16
    %v237 = vshrl.u32 %v232, 16
    %vm238 = vc.u32 %v230, %v234
    %v239 = vsel %vm238, 1, 0
    %v240 = vadd.s32 %v230, %v234
    %v241 = vadd.s32 %v233, %v239
    %vm242 = vc.u32 %v240, %v236
    %v243 = vsel %vm242, 1, 0
    %v244 = vadd.s32 %v240, %v236
    %v245 = vadd.s32 %v241, %v243
    %v246 = vadd.s32 %v245, %v235
    %v247 = vadd.s32 %v246, %v237
    %v248 = vmul.u32 %v203, %v194
    %v249 = vadd.s32 %v225, %v244
    %vm250 = vc.u32 %v225, %v244
    %v251 = vadd.s32 %v247, 1
    %v252 = vsel %vm250, %v251, %v247
    %v253 = vadd.s32 %v248, %v252
    %v254 = vadd.s32 %v253, 536870912
    %v255 = vshrl.u32 %v254, 30
    %v256 = vshll.u32 %v255, 30
    %v257 = vsub.s32 %v253, %v256
    %vm258 = vcmp.lt.s32.totalorder %v257, 0
    %v259 = vsub.s32 0, %v257
    %v260 = vsel %vm258, %v259, %v257
    %v261 = vclz %v260
    %v262 = vsub.s32 %v261, 2
    %vm263 = vcmp.gt.s32.totalorder 0, %v262
    %v264 = vsel %vm263, 0, %v262
    %v265 = vsub.s32 32, %v264
    %v266 = vshll.u32 %v257, %v264
    %v267 = vshrl.u32 %v249, %v265
    %v268 = vor.u32 %v266, %v267
    %v269 = vsub.s32 4294967266, %v264
    %v270 = vadd.s32 %v269, 127
    %v271 = vshll.u32 %v270, 23
    %v272 = vor.u32 4788187, %v271
    %v273 = vand.u32 2147483647, %v272
    %v275 = vcvt.s32.f32 %v268
    %v276 = vmul.f32 %v275, %v273
    %v277 = vxor.u32 %v276, 2147483648
    %v278 = vsel %vm157, %v277, %v276
    %v279 = vsub.s32 4, %v255
    %v280 = vsel %vm157, %v279, %v255
    %v281 = vsel %vm156, %v154, %v278
    %v282 = vsel %vm156, 0, %v280
    %v283 = vmul.f32 %v281, %v281
    %v284 = vmul.f32 %v283, -0.001358992
    %v285 = vadd.f32 %v284, 0.041655596
    %v286 = vmul.f32 %v283, %v285
    %v287 = vadd.f32 %v286, -0.4999988
    %v288 = vmul.f32 %v283, %v287
    %v289 = vadd.f32 1.0, %v288
    %v290 = vmul.f32 %v281, %v281
    %v291 = vmul.f32 %v290, -0.00019511016
    %v292 = vadd.f32 %v291, 0.008332121
    %v293 = vmul.f32 %v290, %v292
    %v294 = vadd.f32 %v293, -0.16666654
    %v295 = vmul.f32 %v290, %v294
    %v296 = vadd.f32 %v295, 1.0
    %v297 = vmul.f32 %v296, %v281
    %vm298 = vweird.f32 %v154
    %v299 = vadd.s32 %v282, 3
    %v300 = vand.u32 %v299, 3
    %vm301 = vcmp.lt.s32.totalorder %v300, 2
    %vm302 = vcmp.eq.s32.totalorder %v300, 0
    %v303 = vxor.u32 %v297, 2147483648
    %v304 = vsel %vm302, %v289, %v303
    %vm305 = vcmp.eq.s32.totalorder %v300, 2
    %v306 = vxor.u32 %v289, 2147483648
    %v307 = vsel %vm305, %v306, %v297
    %v308 = vsel %vm301, %v304, %v307
    %v309 = vsel %vm298, nan, %v308
    %vm310 = vcmp.lt.s32.totalorder %v144, 8
    %v311 = vsel %vm310, %v142, %v309
    %v312 = vpack.c.bf16 %v311, %v311
    %v313 = vld [vmem:[#allocation8] sm:$0xff]
    %v314 = vld [vmem:[#allocation8 + $0x8] sm:$0xff]
    %v315 = vld [vmem:[#allocation8 + $0x10] sm:$0xff]
    %v316 = vld [vmem:[#allocation8 + $0x18] sm:$0xff]
    %v317 = vld [vmem:[#allocation8 + $0x20] sm:$0xff]
    %v318 = vld [vmem:[#allocation8 + $0x28] sm:$0xff]
    %v319 = vld [vmem:[#allocation8 + $0x30] sm:$0xff]
    %v320 = vld [vmem:[#allocation8 + $0x38] sm:$0xff]
    %v321 = vld [vmem:[#allocation8 + $0x40] sm:$0xff]
    %v322 = vld [vmem:[#allocation8 + $0x48] sm:$0xff]
    %v323 = vld [vmem:[#allocation8 + $0x50] sm:$0xff]
    %v324 = vld [vmem:[#allocation8 + $0x58] sm:$0xff]
    %v325 = vld [vmem:[#allocation8 + $0x60] sm:$0xff]
    %v326 = vld [vmem:[#allocation8 + $0x68] sm:$0xff]
    %v327 = vld [vmem:[#allocation8 + $0x70] sm:$0xff]
    %v328 = vld [vmem:[#allocation8 + $0x78] sm:$0xff]
    %v329 = vld [vmem:[%s4] sm:$0x3]
    %v331 = vperm.slane %v329, 0
    %v332 = vperm.slane %v329, 1
    %v351 = vunpack.c.l.b16 %v313
    %v352 = vunpack.c.h.b16 %v313
    %v353 = vunpack.c.l.b16 %v314
    %v354 = vunpack.c.h.b16 %v314
    %v355 = vunpack.c.l.b16 %v315
    %v356 = vunpack.c.h.b16 %v315
    %v357 = vunpack.c.l.b16 %v316
    %v358 = vunpack.c.h.b16 %v316
    %v359 = vunpack.c.l.b16 %v317
    %v360 = vunpack.c.h.b16 %v317
    %v361 = vunpack.c.l.b16 %v318
    %v362 = vunpack.c.h.b16 %v318
    %v363 = vunpack.c.l.b16 %v319
    %v364 = vunpack.c.h.b16 %v319
    %v365 = vunpack.c.l.b16 %v320
    %v366 = vunpack.c.h.b16 %v320
    %v367 = vunpack.c.l.b16 %v321
    %v368 = vunpack.c.h.b16 %v321
    %v369 = vunpack.c.l.b16 %v322
    %v370 = vunpack.c.h.b16 %v322
    %v371 = vunpack.c.l.b16 %v323
    %v372 = vunpack.c.h.b16 %v323
    %v373 = vunpack.c.l.b16 %v324
    %v374 = vunpack.c.h.b16 %v324
    %v375 = vunpack.c.l.b16 %v325
    %v376 = vunpack.c.h.b16 %v325
    %v377 = vunpack.c.l.b16 %v326
    %v378 = vunpack.c.h.b16 %v326
    %v379 = vunpack.c.l.b16 %v327
    %v380 = vunpack.c.h.b16 %v327
    %v381 = vunpack.c.l.b16 %v328
    %v382 = vunpack.c.h.b16 %v328
    %v383 = vpack.c.b16 %v353, %v351
    %v384 = vpack.c.b16 %v354, %v352
    %v385 = vpack.c.b16 %v357, %v355
    %v386 = vpack.c.b16 %v358, %v356
    %v387 = vpack.c.b16 %v361, %v359
    %v388 = vpack.c.b16 %v362, %v360
    %v389 = vpack.c.b16 %v365, %v363
    %v390 = vpack.c.b16 %v366, %v364
    %v391 = vpack.c.b16 %v369, %v367
    %v392 = vpack.c.b16 %v370, %v368
    %v393 = vpack.c.b16 %v373, %v371
    %v394 = vpack.c.b16 %v374, %v372
    %v395 = vpack.c.b16 %v377, %v375
    %v396 = vpack.c.b16 %v378, %v376
    %v397 = vpack.c.b16 %v381, %v379
    %v398 = vpack.c.b16 %v382, %v380
    %415 = vmatpush.bf16.msra.mxu0 %v397
    %416 = vmatpush.bf16.msra.mxu0 %v395
    %417 = vmatpush.bf16.msra.mxu0 %v393
    %418 = vmatpush.bf16.msra.mxu0 %v391
    %419 = vmatpush.bf16.msra.mxu0 %v389
    %420 = vmatpush.bf16.msra.mxu0 %v387
    %421 = vmatpush.bf16.msra.mxu0 %v385
    %422 = vmatpush.bf16.msra.mxu0 %v383
    %423 = vmatmul.bf16.gmra.mxu0 %v312
    %v424 = vpop.f32.mrf.mxu0
    %v425 = vadd.f32 %v331, %v424
    %v426 = vpop.f32.mrf.mxu0
    %427 = vdwg.mxu0
    %428 = vmatpush.bf16.msra.mxu0 %v398
    %429 = vmatpush.bf16.msra.mxu0 %v396
    %430 = vmatpush.bf16.msra.mxu0 %v394
    %431 = vmatpush.bf16.msra.mxu0 %v392
    %432 = vmatpush.bf16.msra.mxu0 %v390
    %433 = vmatpush.bf16.msra.mxu0 %v388
    %434 = vmatpush.bf16.msra.mxu0 %v386
    %435 = vmatpush.bf16.msra.mxu0 %v384
    %436 = vmatmul.bf16.gmra.mxu0 %v312
    %v437 = vpop.f32.mrf.mxu0
    %v438 = vadd.f32 %v332, %v437
    %v439 = vpop.f32.mrf.mxu0
    %440 = vdwg.mxu0
    %vm441 = vcmp.ge.f32.partialorder %v425, 0.0
    %vm442 = vcmp.ge.f32.partialorder %v438, 0.0
    %v443 = vmul.f32 %v425, 0.2
    %v444 = vmul.f32 %v438, 0.2
    %v445 = vsel %vm441, %v425, %v443
    %v446 = vsel %vm442, %v438, %v444
    %v447 = vpack.c.bf16 %v445, %v445
    %v448 = vpack.c.bf16 %v446, %v446
    %v449 = vld [vmem:[#allocation10] sm:$0xff]
    %v450 = vld [vmem:[#allocation10 + $0x8] sm:$0xff]
    %v451 = vld [vmem:[#allocation10 + $0x10] sm:$0xff]
    %v452 = vld [vmem:[#allocation10 + $0x18] sm:$0xff]
    %v453 = vld [vmem:[#allocation10 + $0x20] sm:$0xff]
    %v454 = vld [vmem:[#allocation10 + $0x28] sm:$0xff]
    %v455 = vld [vmem:[#allocation10 + $0x30] sm:$0xff]
    %v456 = vld [vmem:[#allocation10 + $0x38] sm:$0xff]
    %v457 = vld [vmem:[#allocation10 + $0x40] sm:$0xff]
    %v458 = vld [vmem:[#allocation10 + $0x48] sm:$0xff]
    %v459 = vld [vmem:[#allocation10 + $0x50] sm:$0xff]
    %v460 = vld [vmem:[#allocation10 + $0x58] sm:$0xff]
    %v461 = vld [vmem:[#allocation10 + $0x60] sm:$0xff]
    %v462 = vld [vmem:[#allocation10 + $0x68] sm:$0xff]
    %v463 = vld [vmem:[#allocation10 + $0x70] sm:$0xff]
    %v464 = vld [vmem:[#allocation10 + $0x78] sm:$0xff]
    %v465 = vld [vmem:[#allocation10 + $0x80] sm:$0xff]
    %v466 = vld [vmem:[#allocation10 + $0x88] sm:$0xff]
    %v467 = vld [vmem:[#allocation10 + $0x90] sm:$0xff]
    %v468 = vld [vmem:[#allocation10 + $0x98] sm:$0xff]
    %v469 = vld [vmem:[#allocation10 + $0xa0] sm:$0xff]
    %v470 = vld [vmem:[#allocation10 + $0xa8] sm:$0xff]
    %v471 = vld [vmem:[#allocation10 + $0xb0] sm:$0xff]
    %v472 = vld [vmem:[#allocation10 + $0xb8] sm:$0xff]
    %v473 = vld [vmem:[#allocation10 + $0xc0] sm:$0xff]
    %v474 = vld [vmem:[#allocation10 + $0xc8] sm:$0xff]
    %v475 = vld [vmem:[#allocation10 + $0xd0] sm:$0xff]
    %v476 = vld [vmem:[#allocation10 + $0xd8] sm:$0xff]
    %v477 = vld [vmem:[#allocation10 + $0xe0] sm:$0xff]
    %v478 = vld [vmem:[#allocation10 + $0xe8] sm:$0xff]
    %v479 = vld [vmem:[#allocation10 + $0xf0] sm:$0xff]
    %v480 = vld [vmem:[#allocation10 + $0xf8] sm:$0xff]
    %v481 = vld [vmem:[%s6] sm:$0x3]
    %v483 = vperm.slane %v481, 0
    %v484 = vperm.slane %v481, 1
    %v519 = vunpack.c.l.b16 %v449
    %v520 = vunpack.c.h.b16 %v449
    %v521 = vunpack.c.l.b16 %v450
    %v522 = vunpack.c.h.b16 %v450
    %v523 = vunpack.c.l.b16 %v451
    %v524 = vunpack.c.h.b16 %v451
    %v525 = vunpack.c.l.b16 %v452
    %v526 = vunpack.c.h.b16 %v452
    %v527 = vunpack.c.l.b16 %v453
    %v528 = vunpack.c.h.b16 %v453
    %v529 = vunpack.c.l.b16 %v454
    %v530 = vunpack.c.h.b16 %v454
    %v531 = vunpack.c.l.b16 %v455
    %v532 = vunpack.c.h.b16 %v455
    %v533 = vunpack.c.l.b16 %v456
    %v534 = vunpack.c.h.b16 %v456
    %v535 = vunpack.c.l.b16 %v457
    %v536 = vunpack.c.h.b16 %v457
    %v537 = vunpack.c.l.b16 %v458
    %v538 = vunpack.c.h.b16 %v458
    %v539 = vunpack.c.l.b16 %v459
    %v540 = vunpack.c.h.b16 %v459
    %v541 = vunpack.c.l.b16 %v460
    %v542 = vunpack.c.h.b16 %v460
    %v543 = vunpack.c.l.b16 %v461
    %v544 = vunpack.c.h.b16 %v461
    %v545 = vunpack.c.l.b16 %v462
    %v546 = vunpack.c.h.b16 %v462
    %v547 = vunpack.c.l.b16 %v463
    %v548 = vunpack.c.h.b16 %v463
    %v549 = vunpack.c.l.b16 %v464
    %v550 = vunpack.c.h.b16 %v464
    %v551 = vunpack.c.l.b16 %v465
    %v552 = vunpack.c.h.b16 %v465
    %v553 = vunpack.c.l.b16 %v466
    %v554 = vunpack.c.h.b16 %v466
    %v555 = vunpack.c.l.b16 %v467
    %v556 = vunpack.c.h.b16 %v467
    %v557 = vunpack.c.l.b16 %v468
    %v558 = vunpack.c.h.b16 %v468
    %v559 = vunpack.c.l.b16 %v469
    %v560 = vunpack.c.h.b16 %v469
    %v561 = vunpack.c.l.b16 %v470
    %v562 = vunpack.c.h.b16 %v470
    %v563 = vunpack.c.l.b16 %v471
    %v564 = vunpack.c.h.b16 %v471
    %v565 = vunpack.c.l.b16 %v472
    %v566 = vunpack.c.h.b16 %v472
    %v567 = vunpack.c.l.b16 %v473
    %v568 = vunpack.c.h.b16 %v473
    %v569 = vunpack.c.l.b16 %v474
    %v570 = vunpack.c.h.b16 %v474
    %v571 = vunpack.c.l.b16 %v475
    %v572 = vunpack.c.h.b16 %v475
    %v573 = vunpack.c.l.b16 %v476
    %v574 = vunpack.c.h.b16 %v476
    %v575 = vunpack.c.l.b16 %v477
    %v576 = vunpack.c.h.b16 %v477
    %v577 = vunpack.c.l.b16 %v478
    %v578 = vunpack.c.h.b16 %v478
    %v579 = vunpack.c.l.b16 %v479
    %v580 = vunpack.c.h.b16 %v479
    %v581 = vunpack.c.l.b16 %v480
    %v582 = vunpack.c.h.b16 %v480
    %v583 = vpack.c.b16 %v521, %v519
    %v584 = vpack.c.b16 %v522, %v520
    %v585 = vpack.c.b16 %v525, %v523
    %v586 = vpack.c.b16 %v526, %v524
    %v587 = vpack.c.b16 %v529, %v527
    %v588 = vpack.c.b16 %v530, %v528
    %v589 = vpack.c.b16 %v533, %v531
    %v590 = vpack.c.b16 %v534, %v532
    %v591 = vpack.c.b16 %v537, %v535
    %v592 = vpack.c.b16 %v538, %v536
    %v593 = vpack.c.b16 %v541, %v539
    %v594 = vpack.c.b16 %v542, %v540
    %v595 = vpack.c.b16 %v545, %v543
    %v596 = vpack.c.b16 %v546, %v544
    %v597 = vpack.c.b16 %v549, %v547
    %v598 = vpack.c.b16 %v550, %v548
    %v599 = vpack.c.b16 %v553, %v551
    %v600 = vpack.c.b16 %v554, %v552
    %v601 = vpack.c.b16 %v557, %v555
    %v602 = vpack.c.b16 %v558, %v556
    %v603 = vpack.c.b16 %v561, %v559
    %v604 = vpack.c.b16 %v562, %v560
    %v605 = vpack.c.b16 %v565, %v563
    %v606 = vpack.c.b16 %v566, %v564
    %v607 = vpack.c.b16 %v569, %v567
    %v608 = vpack.c.b16 %v570, %v568
    %v609 = vpack.c.b16 %v573, %v571
    %v610 = vpack.c.b16 %v574, %v572
    %v611 = vpack.c.b16 %v577, %v575
    %v612 = vpack.c.b16 %v578, %v576
    %v613 = vpack.c.b16 %v581, %v579
    %v614 = vpack.c.b16 %v582, %v580
    %647 = vmatpush.bf16.msra.mxu0 %v597
    %648 = vmatpush.bf16.msra.mxu0 %v595
    %649 = vmatpush.bf16.msra.mxu0 %v593
    %650 = vmatpush.bf16.msra.mxu0 %v591
    %651 = vmatpush.bf16.msra.mxu0 %v589
    %652 = vmatpush.bf16.msra.mxu0 %v587
    %653 = vmatpush.bf16.msra.mxu0 %v585
    %654 = vmatpush.bf16.msra.mxu0 %v583
    %655 = vmatmul.bf16.gmra.mxu0 %v447
    %v656 = vpop.f32.mrf.mxu0
    %v657 = vadd.f32 %v483, %v656
    %v658 = vpop.f32.mrf.mxu0
    %659 = vdwg.mxu0
    %660 = vmatpush.bf16.msra.mxu0 %v613
    %661 = vmatpush.bf16.msra.mxu0 %v611
    %662 = vmatpush.bf16.msra.mxu0 %v609
    %663 = vmatpush.bf16.msra.mxu0 %v607
    %664 = vmatpush.bf16.msra.mxu0 %v605
    %665 = vmatpush.bf16.msra.mxu0 %v603
    %666 = vmatpush.bf16.msra.mxu0 %v601
    %667 = vmatpush.bf16.msra.mxu0 %v599
    %668 = vmatmul.bf16.gmra.mxu0 %v448
    %v669 = vpop.f32.mrf.mxu0
    %v670 = vadd.f32 %v657, %v669
    %v671 = vpop.f32.mrf.mxu0
    %672 = vdwg.mxu0
    %673 = vmatpush.bf16.msra.mxu0 %v598
    %674 = vmatpush.bf16.msra.mxu0 %v596
    %675 = vmatpush.bf16.msra.mxu0 %v594
    %676 = vmatpush.bf16.msra.mxu0 %v592
    %677 = vmatpush.bf16.msra.mxu0 %v590
    %678 = vmatpush.bf16.msra.mxu0 %v588
    %679 = vmatpush.bf16.msra.mxu0 %v586
    %680 = vmatpush.bf16.msra.mxu0 %v584
    %681 = vmatmul.bf16.gmra.mxu0 %v447
    %v682 = vpop.f32.mrf.mxu0
    %v683 = vadd.f32 %v484, %v682
    %v684 = vpop.f32.mrf.mxu0
    %685 = vdwg.mxu0
    %686 = vmatpush.bf16.msra.mxu0 %v614
    %687 = vmatpush.bf16.msra.mxu0 %v612
    %688 = vmatpush.bf16.msra.mxu0 %v610
    %689 = vmatpush.bf16.msra.mxu0 %v608
    %690 = vmatpush.bf16.msra.mxu0 %v606
    %691 = vmatpush.bf16.msra.mxu0 %v604
    %692 = vmatpush.bf16.msra.mxu0 %v602
    %693 = vmatpush.bf16.msra.mxu0 %v600
    %694 = vmatmul.bf16.gmra.mxu0 %v448
    %v695 = vpop.f32.mrf.mxu0
    %v696 = vadd.f32 %v683, %v695
    %v697 = vpop.f32.mrf.mxu0
    %698 = vdwg.mxu0
    %vm699 = vcmp.ge.f32.partialorder %v670, 0.0
    %vm700 = vcmp.ge.f32.partialorder %v696, 0.0
    %v701 = vmul.f32 %v670, 0.2
    %v702 = vmul.f32 %v696, 0.2
    %v703 = vsel %vm699, %v670, %v701
    %v704 = vsel %vm700, %v696, %v702
    %v705 = vpack.c.bf16 %v703, %v703
    %v706 = vpack.c.bf16 %v704, %v704
    %v707 = vld [vmem:[#allocation11] sm:$0xff]
    %v708 = vld [vmem:[#allocation11 + $0x8] sm:$0xff]
    %v709 = vld [vmem:[#allocation11 + $0x10] sm:$0xff]
    %v710 = vld [vmem:[#allocation11 + $0x18] sm:$0xff]
    %v711 = vld [vmem:[#allocation11 + $0x20] sm:$0xff]
    %v712 = vld [vmem:[#allocation11 + $0x28] sm:$0xff]
    %v713 = vld [vmem:[#allocation11 + $0x30] sm:$0xff]
    %v714 = vld [vmem:[#allocation11 + $0x38] sm:$0xff]
    %v715 = vld [vmem:[#allocation11 + $0x40] sm:$0xff]
    %v716 = vld [vmem:[#allocation11 + $0x48] sm:$0xff]
    %v717 = vld [vmem:[#allocation11 + $0x50] sm:$0xff]
    %v718 = vld [vmem:[#allocation11 + $0x58] sm:$0xff]
    %v719 = vld [vmem:[#allocation11 + $0x60] sm:$0xff]
    %v720 = vld [vmem:[#allocation11 + $0x68] sm:$0xff]
    %v721 = vld [vmem:[#allocation11 + $0x70] sm:$0xff]
    %v722 = vld [vmem:[#allocation11 + $0x78] sm:$0xff]
    %v723 = vld [vmem:[#allocation11 + $0x80] sm:$0xff]
    %v724 = vld [vmem:[#allocation11 + $0x88] sm:$0xff]
    %v725 = vld [vmem:[#allocation11 + $0x90] sm:$0xff]
    %v726 = vld [vmem:[#allocation11 + $0x98] sm:$0xff]
    %v727 = vld [vmem:[#allocation11 + $0xa0] sm:$0xff]
    %v728 = vld [vmem:[#allocation11 + $0xa8] sm:$0xff]
    %v729 = vld [vmem:[#allocation11 + $0xb0] sm:$0xff]
    %v730 = vld [vmem:[#allocation11 + $0xb8] sm:$0xff]
    %v731 = vld [vmem:[#allocation11 + $0xc0] sm:$0xff]
    %v732 = vld [vmem:[#allocation11 + $0xc8] sm:$0xff]
    %v733 = vld [vmem:[#allocation11 + $0xd0] sm:$0xff]
    %v734 = vld [vmem:[#allocation11 + $0xd8] sm:$0xff]
    %v735 = vld [vmem:[#allocation11 + $0xe0] sm:$0xff]
    %v736 = vld [vmem:[#allocation11 + $0xe8] sm:$0xff]
    %v737 = vld [vmem:[#allocation11 + $0xf0] sm:$0xff]
    %v738 = vld [vmem:[#allocation11 + $0xf8] sm:$0xff]
    %v739 = vld [vmem:[%s8] sm:$0x3]
    %v741 = vperm.slane %v739, 0
    %v742 = vperm.slane %v739, 1
    %v777 = vunpack.c.l.b16 %v707
    %v778 = vunpack.c.h.b16 %v707
    %v779 = vunpack.c.l.b16 %v708
    %v780 = vunpack.c.h.b16 %v708
    %v781 = vunpack.c.l.b16 %v709
    %v782 = vunpack.c.h.b16 %v709
    %v783 = vunpack.c.l.b16 %v710
    %v784 = vunpack.c.h.b16 %v710
    %v785 = vunpack.c.l.b16 %v711
    %v786 = vunpack.c.h.b16 %v711
    %v787 = vunpack.c.l.b16 %v712
    %v788 = vunpack.c.h.b16 %v712
    %v789 = vunpack.c.l.b16 %v713
    %v790 = vunpack.c.h.b16 %v713
    %v791 = vunpack.c.l.b16 %v714
    %v792 = vunpack.c.h.b16 %v714
    %v793 = vunpack.c.l.b16 %v715
    %v794 = vunpack.c.h.b16 %v715
    %v795 = vunpack.c.l.b16 %v716
    %v796 = vunpack.c.h.b16 %v716
    %v797 = vunpack.c.l.b16 %v717
    %v798 = vunpack.c.h.b16 %v717
    %v799 = vunpack.c.l.b16 %v718
    %v800 = vunpack.c.h.b16 %v718
    %v801 = vunpack.c.l.b16 %v719
    %v802 = vunpack.c.h.b16 %v719
    %v803 = vunpack.c.l.b16 %v720
    %v804 = vunpack.c.h.b16 %v720
    %v805 = vunpack.c.l.b16 %v721
    %v806 = vunpack.c.h.b16 %v721
    %v807 = vunpack.c.l.b16 %v722
    %v808 = vunpack.c.h.b16 %v722
    %v809 = vunpack.c.l.b16 %v723
    %v810 = vunpack.c.h.b16 %v723
    %v811 = vunpack.c.l.b16 %v724
    %v812 = vunpack.c.h.b16 %v724
    %v813 = vunpack.c.l.b16 %v725
    %v814 = vunpack.c.h.b16 %v725
    %v815 = vunpack.c.l.b16 %v726
    %v816 = vunpack.c.h.b16 %v726
    %v817 = vunpack.c.l.b16 %v727
    %v818 = vunpack.c.h.b16 %v727
    %v819 = vunpack.c.l.b16 %v728
    %v820 = vunpack.c.h.b16 %v728
    %v821 = vunpack.c.l.b16 %v729
    %v822 = vunpack.c.h.b16 %v729
    %v823 = vunpack.c.l.b16 %v730
    %v824 = vunpack.c.h.b16 %v730
    %v825 = vunpack.c.l.b16 %v731
    %v826 = vunpack.c.h.b16 %v731
    %v827 = vunpack.c.l.b16 %v732
    %v828 = vunpack.c.h.b16 %v732
    %v829 = vunpack.c.l.b16 %v733
    %v830 = vunpack.c.h.b16 %v733
    %v831 = vunpack.c.l.b16 %v734
    %v832 = vunpack.c.h.b16 %v734
    %v833 = vunpack.c.l.b16 %v735
    %v834 = vunpack.c.h.b16 %v735
    %v835 = vunpack.c.l.b16 %v736
    %v836 = vunpack.c.h.b16 %v736
    %v837 = vunpack.c.l.b16 %v737
    %v838 = vunpack.c.h.b16 %v737
    %v839 = vunpack.c.l.b16 %v738
    %v840 = vunpack.c.h.b16 %v738
    %v841 = vpack.c.b16 %v779, %v777
    %v842 = vpack.c.b16 %v780, %v778
    %v843 = vpack.c.b16 %v783, %v781
    %v844 = vpack.c.b16 %v784, %v782
    %v845 = vpack.c.b16 %v787, %v785
    %v846 = vpack.c.b16 %v788, %v786
    %v847 = vpack.c.b16 %v791, %v789
    %v848 = vpack.c.b16 %v792, %v790
    %v849 = vpack.c.b16 %v795, %v793
    %v850 = vpack.c.b16 %v796, %v794
    %v851 = vpack.c.b16 %v799, %v797
    %v852 = vpack.c.b16 %v800, %v798
    %v853 = vpack.c.b16 %v803, %v801
    %v854 = vpack.c.b16 %v804, %v802
    %v855 = vpack.c.b16 %v807, %v805
    %v856 = vpack.c.b16 %v808, %v806
    %v857 = vpack.c.b16 %v811, %v809
    %v858 = vpack.c.b16 %v812, %v810
    %v859 = vpack.c.b16 %v815, %v813
    %v860 = vpack.c.b16 %v816, %v814
    %v861 = vpack.c.b16 %v819, %v817
    %v862 = vpack.c.b16 %v820, %v818
    %v863 = vpack.c.b16 %v823, %v821
    %v864 = vpack.c.b16 %v824, %v822
    %v865 = vpack.c.b16 %v827, %v825
    %v866 = vpack.c.b16 %v828, %v826
    %v867 = vpack.c.b16 %v831, %v829
    %v868 = vpack.c.b16 %v832, %v830
    %v869 = vpack.c.b16 %v835, %v833
    %v870 = vpack.c.b16 %v836, %v834
    %v871 = vpack.c.b16 %v839, %v837
    %v872 = vpack.c.b16 %v840, %v838
    %905 = vmatpush.bf16.msra.mxu0 %v855
    %906 = vmatpush.bf16.msra.mxu0 %v853
    %907 = vmatpush.bf16.msra.mxu0 %v851
    %908 = vmatpush.bf16.msra.mxu0 %v849
    %909 = vmatpush.bf16.msra.mxu0 %v847
    %910 = vmatpush.bf16.msra.mxu0 %v845
    %911 = vmatpush.bf16.msra.mxu0 %v843
    %912 = vmatpush.bf16.msra.mxu0 %v841
    %913 = vmatmul.bf16.gmra.mxu0 %v705
    %v914 = vpop.f32.mrf.mxu0
    %v915 = vadd.f32 %v741, %v914
    %v916 = vpop.f32.mrf.mxu0
    %917 = vdwg.mxu0
    %918 = vmatpush.bf16.msra.mxu0 %v871
    %919 = vmatpush.bf16.msra.mxu0 %v869
    %920 = vmatpush.bf16.msra.mxu0 %v867
    %921 = vmatpush.bf16.msra.mxu0 %v865
    %922 = vmatpush.bf16.msra.mxu0 %v863
    %923 = vmatpush.bf16.msra.mxu0 %v861
    %924 = vmatpush.bf16.msra.mxu0 %v859
    %925 = vmatpush.bf16.msra.mxu0 %v857
    %926 = vmatmul.bf16.gmra.mxu0 %v706
    %v927 = vpop.f32.mrf.mxu0
    %v928 = vadd.f32 %v915, %v927
    %v929 = vpop.f32.mrf.mxu0
    %930 = vdwg.mxu0
    %931 = vmatpush.bf16.msra.mxu0 %v856
    %932 = vmatpush.bf16.msra.mxu0 %v854
    %933 = vmatpush.bf16.msra.mxu0 %v852
    %934 = vmatpush.bf16.msra.mxu0 %v850
    %935 = vmatpush.bf16.msra.mxu0 %v848
    %936 = vmatpush.bf16.msra.mxu0 %v846
    %937 = vmatpush.bf16.msra.mxu0 %v844
    %938 = vmatpush.bf16.msra.mxu0 %v842
    %939 = vmatmul.bf16.gmra.mxu0 %v705
    %v940 = vpop.f32.mrf.mxu0
    %v941 = vadd.f32 %v742, %v940
    %v942 = vpop.f32.mrf.mxu0
    %943 = vdwg.mxu0
    %944 = vmatpush.bf16.msra.mxu0 %v872
    %945 = vmatpush.bf16.msra.mxu0 %v870
    %946 = vmatpush.bf16.msra.mxu0 %v868
    %947 = vmatpush.bf16.msra.mxu0 %v866
    %948 = vmatpush.bf16.msra.mxu0 %v864
    %949 = vmatpush.bf16.msra.mxu0 %v862
    %950 = vmatpush.bf16.msra.mxu0 %v860
    %951 = vmatpush.bf16.msra.mxu0 %v858
    %952 = vmatmul.bf16.gmra.mxu0 %v706
    %v953 = vpop.f32.mrf.mxu0
    %v954 = vadd.f32 %v941, %v953
    %v955 = vpop.f32.mrf.mxu0
    %956 = vdwg.mxu0
    %vm957 = vcmp.ge.f32.partialorder %v928, 0.0
    %vm958 = vcmp.ge.f32.partialorder %v954, 0.0
    %v959 = vmul.f32 %v928, 0.2
    %v960 = vmul.f32 %v954, 0.2
    %v961 = vsel %vm957, %v928, %v959
    %v962 = vsel %vm958, %v954, %v960
    %v963 = vpack.c.bf16 %v961, %v961
    %v964 = vpack.c.bf16 %v962, %v962
    %v965 = vld [vmem:[#allocation13] sm:$0xf]
    %v966 = vld [vmem:[#allocation13 + $0x4] sm:$0xf]
    %v967 = vld [vmem:[#allocation13 + $0x8] sm:$0xf]
    %v968 = vld [vmem:[#allocation13 + $0xc] sm:$0xf]
    %v969 = vld [vmem:[#allocation13 + $0x10] sm:$0xf]
    %v970 = vld [vmem:[#allocation13 + $0x14] sm:$0xf]
    %v971 = vld [vmem:[#allocation13 + $0x18] sm:$0xf]
    %v972 = vld [vmem:[#allocation13 + $0x1c] sm:$0xf]
    %v973 = vld [vmem:[#allocation13 + $0x20] sm:$0xf]
    %v974 = vld [vmem:[#allocation13 + $0x24] sm:$0xf]
    %v975 = vld [vmem:[#allocation13 + $0x28] sm:$0xf]
    %v976 = vld [vmem:[#allocation13 + $0x2c] sm:$0xf]
    %v977 = vld [vmem:[#allocation13 + $0x30] sm:$0xf]
    %v978 = vld [vmem:[#allocation13 + $0x34] sm:$0xf]
    %v979 = vld [vmem:[#allocation13 + $0x38] sm:$0xf]
    %v980 = vld [vmem:[#allocation13 + $0x3c] sm:$0xf]
    %v981 = vld [vmem:[#allocation13 + $0x40] sm:$0xf]
    %v982 = vld [vmem:[#allocation13 + $0x44] sm:$0xf]
    %v983 = vld [vmem:[#allocation13 + $0x48] sm:$0xf]
    %v984 = vld [vmem:[#allocation13 + $0x4c] sm:$0xf]
    %v985 = vld [vmem:[#allocation13 + $0x50] sm:$0xf]
    %v986 = vld [vmem:[#allocation13 + $0x54] sm:$0xf]
    %v987 = vld [vmem:[#allocation13 + $0x58] sm:$0xf]
    %v988 = vld [vmem:[#allocation13 + $0x5c] sm:$0xf]
    %v989 = vld [vmem:[#allocation13 + $0x60] sm:$0xf]
    %v990 = vld [vmem:[#allocation13 + $0x64] sm:$0xf]
    %v991 = vld [vmem:[#allocation13 + $0x68] sm:$0xf]
    %v992 = vld [vmem:[#allocation13 + $0x6c] sm:$0xf]
    %v993 = vld [vmem:[#allocation13 + $0x70] sm:$0xf]
    %v994 = vld [vmem:[#allocation13 + $0x74] sm:$0xf]
    %v995 = vld [vmem:[#allocation13 + $0x78] sm:$0xf]
    %v996 = vld [vmem:[#allocation13 + $0x7c] sm:$0xf]
    %v997 = vld [vmem:[%s10] sm:$0x1]
    %v999 = vperm.slane %v997, 0
    %v1033 = vunpack.c.l.b16 %v965
    %v1034 = vunpack.c.l.b16 %v966
    %v1035 = vunpack.c.l.b16 %v967
    %v1036 = vunpack.c.l.b16 %v968
    %v1037 = vunpack.c.l.b16 %v969
    %v1038 = vunpack.c.l.b16 %v970
    %v1039 = vunpack.c.l.b16 %v971
    %v1040 = vunpack.c.l.b16 %v972
    %v1041 = vunpack.c.l.b16 %v973
    %v1042 = vunpack.c.l.b16 %v974
    %v1043 = vunpack.c.l.b16 %v975
    %v1044 = vunpack.c.l.b16 %v976
    %v1045 = vunpack.c.l.b16 %v977
    %v1046 = vunpack.c.l.b16 %v978
    %v1047 = vunpack.c.l.b16 %v979
    %v1048 = vunpack.c.l.b16 %v980
    %v1049 = vunpack.c.l.b16 %v981
    %v1050 = vunpack.c.l.b16 %v982
    %v1051 = vunpack.c.l.b16 %v983
    %v1052 = vunpack.c.l.b16 %v984
    %v1053 = vunpack.c.l.b16 %v985
    %v1054 = vunpack.c.l.b16 %v986
    %v1055 = vunpack.c.l.b16 %v987
    %v1056 = vunpack.c.l.b16 %v988
    %v1057 = vunpack.c.l.b16 %v989
    %v1058 = vunpack.c.l.b16 %v990
    %v1059 = vunpack.c.l.b16 %v991
    %v1060 = vunpack.c.l.b16 %v992
    %v1061 = vunpack.c.l.b16 %v993
    %v1062 = vunpack.c.l.b16 %v994
    %v1063 = vunpack.c.l.b16 %v995
    %v1064 = vunpack.c.l.b16 %v996
    %v1065 = vpack.c.b16 %v1034, %v1033
    %v1066 = vpack.c.b16 %v1036, %v1035
    %v1067 = vpack.c.b16 %v1038, %v1037
    %v1068 = vpack.c.b16 %v1040, %v1039
    %v1069 = vpack.c.b16 %v1042, %v1041
    %v1070 = vpack.c.b16 %v1044, %v1043
    %v1071 = vpack.c.b16 %v1046, %v1045
    %v1072 = vpack.c.b16 %v1048, %v1047
    %v1073 = vpack.c.b16 %v1050, %v1049
    %v1074 = vpack.c.b16 %v1052, %v1051
    %v1075 = vpack.c.b16 %v1054, %v1053
    %v1076 = vpack.c.b16 %v1056, %v1055
    %v1077 = vpack.c.b16 %v1058, %v1057
    %v1078 = vpack.c.b16 %v1060, %v1059
    %v1079 = vpack.c.b16 %v1062, %v1061
    %v1080 = vpack.c.b16 %v1064, %v1063
    %1097 = vmatpush.bf16.msra.mxu0 %v1072
    %1098 = vmatpush.bf16.msra.mxu0 %v1071
    %1099 = vmatpush.bf16.msra.mxu0 %v1070
    %1100 = vmatpush.bf16.msra.mxu0 %v1069
    %1101 = vmatpush.bf16.msra.mxu0 %v1068
    %1102 = vmatpush.bf16.msra.mxu0 %v1067
    %1103 = vmatpush.bf16.msra.mxu0 %v1066
    %1104 = vmatpush.bf16.msra.mxu0 %v1065
    %1105 = vmatmul.bf16.gmra.mxu0 %v963
    %v1106 = vpop.f32.mrf.mxu0
    %v1107 = vadd.f32 %v999, %v1106
    %v1108 = vpop.f32.mrf.mxu0
    %1109 = vdwg.mxu0
    %1110 = vmatpush.bf16.msra.mxu0 %v1080
    %1111 = vmatpush.bf16.msra.mxu0 %v1079
    %1112 = vmatpush.bf16.msra.mxu0 %v1078
    %1113 = vmatpush.bf16.msra.mxu0 %v1077
    %1114 = vmatpush.bf16.msra.mxu0 %v1076
    %1115 = vmatpush.bf16.msra.mxu0 %v1075
    %1116 = vmatpush.bf16.msra.mxu0 %v1074
    %1117 = vmatpush.bf16.msra.mxu0 %v1073
    %1118 = vmatmul.bf16.gmra.mxu0 %v964
    %v1119 = vpop.f32.mrf.mxu0
    %v1120 = vadd.f32 %v1107, %v1119
    %v1121 = vpop.f32.mrf.mxu0
    %1122 = vdwg.mxu0
    %vm1123 = vcmp.lt.s32.totalorder %v144, 9
    %v1124 = vsel %vm1123, %v1120, -1e+30
    %1125 = vmax.xlane.f32.xlu0 %v1124
    %v1126 = vpop.xlane.xlu0 %1125
    %v1127 = vsub.f32 %v1124, %v1126
    %v1128 = vmul.f32 %v1127, 1.442695
    %v1129 = vpow.pop %v1128
    %1130 = vadd.xlane.f32.xlu0 %v1129
    %v1131 = vpop.xlane.xlu0 %1130
    %v1132 = vrcp.pop %v1131
    %v1133 = vmul.f32 %v1129, %v1132
    %vm1134 = vcmp.eq.s32.totalorder %v144, 9
    %v1135 = vsel %vm1134, %v1120, 0.0
    %v1136 = vadd.f32 %v1133, %v1135
    %1137 = vst [vmem:[#allocation14] sm:$0xff] %v1136
    // Predicated region
    $region74: #{tpu_custom_call.1} parent=1 // pred_check
      _
    $region75: #{tpu_custom_call.1} parent=1 // pred_check_branch
      %1139 = sbr.rel (0) target = $region77
    $region76: #{tpu_custom_call.1} parent=1 // pred_region
      %1141 = vsyncadd [#allocation4], 0
      %s1143 = sshll.u32 [#allocation14], 4
      %s1144 = int_to_ptr.vmem [resolvable:$true] %s1143
      %s1145 = sshll.u32 %s11, 4
      %s1146 = int_to_ptr.hbm [resolvable:$true] %s1145
      %1148 = dma.vmem_to_hbm [thread:$0]  %s1144, 128, %s1146, [#allocation4]
    $region77: #{tpu_custom_call.1} parent=1 // pred_fallthru
      _
    // Predicated region
    $region78: #{tpu_custom_call.1} parent=1 // pred_check
      _
    $region79: #{tpu_custom_call.1} parent=1 // pred_check_branch
      %1150 = sbr.rel (0) target = $region81
    $region80: #{tpu_custom_call.1} parent=1 // pred_region
      %1152 = dma.done [#allocation4], 128
    $region81: #{tpu_custom_call.1} parent=1 // pred_fallthru
      _
    %1153 = vsyncpa [#allocation3], 1
    %1154 = vsyncpa [#allocation6], 1
    %1155 = vsyncpa [#allocation9], 1
    %1156 = vsyncpa [#allocation12], 1
    %1157 = vsyncpa [#allocation4], 1

</llo_original>
